<compile_context>
chip_gen: v6e
topology: v6e:2x2x1
jax: 0.10.0
libtpu: 0.0.40
codegen_flags: <defaults>
</compile_context>

<pallas_src>
import jax
import jax.numpy as jnp
from jax import lax
from jax.experimental import pallas as pl
from jax.experimental.pallas import tpu as pltpu


def _tile(dim, align, cap):
    """Largest legal tile: full dim if dim < align, else an `align`-multiple <= min(dim, cap)."""
    if dim < align:
        return dim                      # block == full array dim (always legal)
    return min(cap, (dim // align) * align)


def _tpu_tile_config():
    """Per-generation tile caps / VMEM budget (conservative default = v7x-safe)."""
    try:
        kind = jax.devices()[0].device_kind.lower()
    except Exception:  # pragma: no cover - defensive
        kind = ""
    if ("v5" in kind) or ("v6" in kind):
        # 128 MiB VMEM parts: bigger lane dim, looser VMEM cap.
        return {"tm_max": 1024, "tn_max": 4096, "vmem_cap": 80 << 20}
    # v7x (64 MiB VMEM) / unknown: 8 MiB f32 out tile, tight cap.
    return {"tm_max": 1024, "tn_max": 2048, "vmem_cap": 48 << 20}


def _cbmf_kernel(avg_ref, u_ref, i_ref, out_ref):
    # avg_ref: SMEM (1,) f32 ; u_ref: [tm, F] ; i_ref: [tn, F] ; out_ref: [tm, tn]
    # Contract over the last dim of BOTH operands -> MXU consumes both tiles in
    # their natural [rows, F] layout, no transpose materialized.
    pred = lax.dot_general(
        u_ref[...],
        i_ref[...],
        dimension_numbers=(((1,), (1,)), ((), ())),
        preferred_element_type=jnp.float32,
    )
    out_ref[...] = (pred + avg_ref[0]).astype(out_ref.dtype)


def _cbmf_predict_pallas(user_emb, item_emb, average, *,
                         out_dtype=jnp.float32, compute_dtype=None):
    """predict = user_emb @ item_emb.T + average, tiled on the MXU."""
    U, F = user_emb.shape
    I, _ = item_emb.shape

    cfg = _tpu_tile_config()
    tm = _tile(U, 8, cfg["tm_max"])      # sublane-aligned rows
    tn = _tile(I, 128, cfg["tn_max"])    # lane-dense columns (bulk blocks)

    if compute_dtype is not None:
        # Optional input-traffic cut (bf16): dot still accumulates in f32.
        user_emb = user_emb.astype(compute_dtype)
        item_emb = item_emb.astype(compute_dtype)

    avg = jnp.asarray(average, dtype=jnp.float32).reshape((1,))

    # No tile-multiple padding: Pallas masks partial edge blocks; garbage rows
    # read past U/I only feed output elements that are dropped on store.
    grid = (pl.cdiv(U, tm), pl.cdiv(I, tn))

    in_itemsize = jnp.dtype(user_emb.dtype).itemsize
    out_itemsize = jnp.dtype(out_dtype).itemsize

    # Double-buffered VMEM need: out tile + user tile + item tile.
    need = 2 * (tm * tn * out_itemsize + (tm + tn) * F * in_itemsize)
    vmem_limit = int(min(cfg["vmem_cap"], max(need + (8 << 20), 32 << 20)))

    cost = pl.CostEstimate(
        flops=2 * U * I * F,
        transcendentals=0,
        bytes_accessed=(U * I * out_itemsize          # output writeback
                        + U * F * in_itemsize         # user slab (once)
                        + grid[0] * I * F * in_itemsize),  # item slab re-fetch
    )

    return pl.pallas_call(
        _cbmf_kernel,
        out_shape=jax.ShapeDtypeStruct((U, I), out_dtype),
        grid=grid,
        in_specs=[
            pl.BlockSpec(memory_space=pltpu.SMEM),          # average scalar
            pl.BlockSpec((tm, F), lambda i, j: (i, 0)),     # user tile
            pl.BlockSpec((tn, F), lambda i, j: (j, 0)),     # item tile
        ],
        out_specs=pl.BlockSpec((tm, tn), lambda i, j: (i, j)),
        compiler_params=pltpu.CompilerParams(
            dimension_semantics=("parallel", "parallel"),
            vmem_limit_bytes=vmem_limit,
        ),
        cost_estimate=cost,
    )(avg, user_emb, item_emb)


def cbmf_forward(embed_user_w, embed_item_w, user_idx, item_idx, average,
                 *, use_pallas=None, out_dtype=jnp.float32, compute_dtype=None):
    """Replicates CBMF.forward. Returns (predict, user_emb, item_emb)."""
    # Glue: embedding lookup (gather) in plain JAX; O(U*F + I*F) bytes, tiny
    # vs. the U*I output traffic at scoring scale.
    user_emb = jnp.take(embed_user_w, user_idx, axis=0)   # [U, F]
    item_emb = jnp.take(embed_item_w, item_idx, axis=0)   # [I, F]

    U = user_emb.shape[0]
    I = item_emb.shape[0]

    if use_pallas is None:
        # Pallas launch + per-step overhead dwarfs tiny matmuls; gate by size.
        use_pallas = (U * I) >= 64 * 1024

    if use_pallas:
        predict = _cbmf_predict_pallas(
            user_emb, item_emb, average,
            out_dtype=out_dtype, compute_dtype=compute_dtype)
    else:
        predict = (user_emb @ item_emb.T
                   + jnp.asarray(average, jnp.float32)).astype(out_dtype)

    return predict, user_emb, item_emb


if __name__ == "__main__":
    # Module hyper-params (synthetic, deterministic init).
    usernum, itemnum, factor_num = 50, 60, 32

    key = jax.random.PRNGKey(0)
    k_uw, k_iw, k_ui, k_ii = jax.random.split(key, 4)

    # nn.init.normal_(weight, std=0.01)
    embed_user_w = (0.01 * jax.random.normal(k_uw, (usernum, factor_num))).astype(jnp.float32)
    embed_item_w = (0.01 * jax.random.normal(k_iw, (itemnum, factor_num))).astype(jnp.float32)
    # user_bias / item_bias exist in __init__ but are unused in forward.

    # Small batch of query indices.
    user_idx = jax.random.randint(k_ui, (8,), 0, usernum)
    item_idx = jax.random.randint(k_ii, (8,), 0, itemnum)
    average = 3.5

    # Force the Pallas path so the kernel itself is exercised at this toy size
    # (the size gate would otherwise route it to plain XLA).
    predict, user_emb, item_emb = cbmf_forward(
        embed_user_w, embed_item_w, user_idx, item_idx, average, use_pallas=True
    )
    jax.block_until_ready(predict)
    jax.block_until_ready(user_emb)
    jax.block_until_ready(item_emb)

    # Reference check in plain JAX (f32 semantics preserved end-to-end).
    ref = user_emb @ item_emb.T + average
    assert predict.shape == (user_idx.shape[0], item_idx.shape[0])
    assert jnp.allclose(predict, ref, atol=1e-5), "mismatch vs reference"

    print("KERNEL_OK")
</pallas_src>

<mosaic_0001>
module attributes {stable_mosaic.version = 11 : i64} {
  func.func @_cbmf_kernel(%arg0: i32, %arg1: i32, %arg2: memref<1xf32, #tpu.memory_space<smem>>, %arg3: memref<8x32xf32, #tpu.memory_space<vmem>>, %arg4: memref<8x32xf32, #tpu.memory_space<vmem>>, %arg5: memref<8x8xf32, #tpu.memory_space<vmem>>) attributes {dimension_semantics = [#tpu.dimension_semantics<parallel>, #tpu.dimension_semantics<parallel>], iteration_bounds = array<i64: 1, 1>, scalar_prefetch = 0 : i64, scratch_operands = 0 : i64, tpu.core_type = #tpu.core_type<tc>, window_params = [{transform_indices = @transform_0, window_bounds = array<i64: 1>}, {transform_indices = @transform_1, window_bounds = array<i64: 8, 32>}, {transform_indices = @transform_2, window_bounds = array<i64: 8, 32>}, {transform_indices = @transform_3, window_bounds = array<i64: 8, 8>}]} {
    %c0 = arith.constant 0 : index
    %c0_0 = arith.constant 0 : index
    %0 = vector.load %arg3[%c0, %c0_0] : memref<8x32xf32, #tpu.memory_space<vmem>>, vector<8x32xf32>
    %c0_1 = arith.constant 0 : index
    %c0_2 = arith.constant 0 : index
    %1 = vector.load %arg4[%c0_1, %c0_2] : memref<8x32xf32, #tpu.memory_space<vmem>>, vector<8x32xf32>
    %cst = arith.constant dense<0.000000e+00> : vector<8x8xf32>
    %2 = tpu.matmul %0, %1, %cst {dimension_numbers = #tpu.dot_dimension_numbers<[1], [1], [0], [0], [0, 0, 1, 0], [], []>} : vector<8x32xf32>, vector<8x32xf32>, vector<8x8xf32> -> vector<8x8xf32>
    %c0_3 = arith.constant 0 : index
    %3 = memref.load %arg2[%c0_3] : memref<1xf32, #tpu.memory_space<smem>>
    %4 = vector.broadcast %3 : f32 to vector<8x8xf32>
    %5 = arith.addf %2, %4 : vector<8x8xf32>
    %c0_4 = arith.constant 0 : index
    %c0_5 = arith.constant 0 : index
    %6 = vector.load %arg5[%c0_4, %c0_5] : memref<8x8xf32, #tpu.memory_space<vmem>>, vector<8x8xf32>
    tpu.vector_store %arg5[%c0_4, %c0_5], %5 {strides = array<i32>} : memref<8x8xf32, #tpu.memory_space<vmem>>, vector<8x8xf32>,
    return
  }
  func.func @transform_0(%arg0: i32, %arg1: i32) -> i32 {
    %c0_i32 = arith.constant 0 : i32
    %c0_i32_0 = arith.constant 0 : i32
    return %c0_i32 : i32
  }
  func.func @transform_1(%arg0: i32, %arg1: i32) -> (i32, i32) {
    %c0_i32 = arith.constant 0 : i32
    %c0_i32_0 = arith.constant 0 : i32
    return %arg0, %c0_i32 : i32, i32
  }
  func.func @transform_2(%arg0: i32, %arg1: i32) -> (i32, i32) {
    %c0_i32 = arith.constant 0 : i32
    %c0_i32_0 = arith.constant 0 : i32
    return %arg1, %c0_i32 : i32, i32
  }
  func.func @transform_3(%arg0: i32, %arg1: i32) -> (i32, i32) {
    %c0_i32 = arith.constant 0 : i32
    return %arg0, %arg1 : i32, i32
  }
}

</mosaic_0001>

<llo_original>
// kernel: tpu_custom_call.1
$region0: #{tpu_custom_call.1}
  #allocation0 [shape = 'u32[]', space=smem, size = 0x4, offset = 0x4, fixed_abs, tag = 'smem constant byte address 0x4 - core index']
  #allocation1 [shape = 'u32[144,128]{1,0:T(1,128)}', space=vmem, size = 0x12000, scoped, tag = 'internal scratch']
  #allocation2 [shape = 'f32[1]{0:T(128)S(6)}', space=smem, size = 0x200, scoped, tag = 'scoped memory for tpu_custom_call.1']
  %s0 = inlined_call_operand.<no memory space> [shape: f32[1], index: 0, kind: input, shape index: {}]
  %s1 = inlined_call_operand.hbm [shape: f32[8,32], index: 1, kind: input, shape index: {}]
  %s2 = inlined_call_operand.hbm [shape: f32[8,32], index: 2, kind: input, shape index: {}]
  %s3 = inlined_call_operand.hbm [shape: f32[8,8], index: 3, kind: output, shape index: {}]
  %s4 = sld [smem:[#allocation0]]
  $region30: #{tpu_custom_call.1} parent=0
    _
  %s6 = ssub.s32 1, %s4
  %s7 = scalar_select 0, %s6, %s4
  %8 = sst [smem:[#allocation2]] %s0
  $region1: #{tpu_custom_call.1} parent=0
    #allocation3 [shape = 'u8[4096]{0}', space=vmem, size = 0x1000, scoped, tag = 'input window, operand 1, single buffered']
    #allocation4 [shape = 's32[1]{0}', space=sflag, size = 0x4, scoped, tag = 'scoped memory for tpu_custom_call.1']
    #allocation5 [shape = 's32[1]{0}', space=sflag, size = 0x4, scoped, tag = 'scoped memory for tpu_custom_call.1']
    #allocation6 [shape = 'u8[4096]{0}', space=vmem, size = 0x1000, scoped, tag = 'input window, operand 2, single buffered']
    #allocation7 [shape = 's32[1]{0}', space=sflag, size = 0x4, scoped, tag = 'scoped memory for tpu_custom_call.1']
    #allocation8 [shape = 'u8[4096]{0}', space=vmem, size = 0x1000, scoped, tag = 'output window, operand 0, single buffered']
    %9 = vsyncpa [#allocation4], 0
    %10 = vsyncpa [#allocation7], 0
    %11 = vsyncpa [#allocation5], 0
    // Predicated region
    $region2: #{tpu_custom_call.1} parent=1 // pred_check
      _
    $region3: #{tpu_custom_call.1} parent=1 // pred_check_branch
      %13 = sbr.rel (0) target = $region5
    $region4: #{tpu_custom_call.1} parent=1 // pred_region
      _
    $region5: #{tpu_custom_call.1} parent=1 // pred_fallthru
      _
    // Predicated region
    $region6: #{tpu_custom_call.1} parent=1 // pred_check
      _
    $region7: #{tpu_custom_call.1} parent=1 // pred_check_branch
      %15 = sbr.rel (0) target = $region9
    $region8: #{tpu_custom_call.1} parent=1 // pred_region
      %s17 = ssub.s32 128, 128
      %18 = vsyncadd [#allocation4], %s17
      %s20 = sshll.u32 [#allocation3], 4
      %s21 = int_to_ptr.vmem [resolvable:$true] %s20
      %23 = dma.hbm_to_vmem [thread:$0]  %s1, 128, %s21, [#allocation4]
    $region9: #{tpu_custom_call.1} parent=1 // pred_fallthru
      _
    // Predicated region
    $region10: #{tpu_custom_call.1} parent=1 // pred_check
      _
    $region11: #{tpu_custom_call.1} parent=1 // pred_check_branch
      %25 = sbr.rel (0) target = $region13
    $region12: #{tpu_custom_call.1} parent=1 // pred_region
      %s27 = ssub.s32 128, 128
      %28 = vsyncadd [#allocation7], %s27
      %s30 = sshll.u32 [#allocation6], 4
      %s31 = int_to_ptr.vmem [resolvable:$true] %s30
      %33 = dma.hbm_to_vmem [thread:$0]  %s2, 128, %s31, [#allocation7]
    $region13: #{tpu_custom_call.1} parent=1 // pred_fallthru
      _
    // Predicated region
    $region14: #{tpu_custom_call.1} parent=1 // pred_check
      _
    $region15: #{tpu_custom_call.1} parent=1 // pred_check_branch
      %35 = sbr.rel (0) target = $region17
    $region16: #{tpu_custom_call.1} parent=1 // pred_region
      %36 = dma.done [#allocation4], 128
    $region17: #{tpu_custom_call.1} parent=1 // pred_fallthru
      _
    // Predicated region
    $region18: #{tpu_custom_call.1} parent=1 // pred_check
      _
    $region19: #{tpu_custom_call.1} parent=1 // pred_check_branch
      %38 = sbr.rel (0) target = $region21
    $region20: #{tpu_custom_call.1} parent=1 // pred_region
      %39 = dma.done [#allocation7], 128
    $region21: #{tpu_custom_call.1} parent=1 // pred_fallthru
      _
    %v40 = vld [vmem:[#allocation3] sm:$0xff]
    %v41 = vld [vmem:[#allocation6] sm:$0xff]
    %s42 = sld [smem:[#allocation2]]
    %v43 = vstv %s42
    %vm44 = vcmask 261120
    %v46 = vsel %vm44, %v40, 0
    %v49 = vsel %vm44, %v41, 0
    %51 = vmatprep.subr.mxu0 0.0
    %52 = vmatpush1.xpose.msra.mxu0 0.0
    %53 = vmatprep.subr.mxu0 0.0
    %54 = vmatpush1.xpose.msra.mxu0 0.0
    %55 = vmatprep.subr.mxu0 0.0
    %56 = vmatpush1.xpose.msra.mxu0 0.0
    %57 = vmatprep.subr.mxu0 0.0
    %58 = vmatpush1.xpose.msra.mxu0 0.0
    %59 = vmatprep.subr.mxu0 0.0
    %60 = vmatpush1.xpose.msra.mxu0 0.0
    %61 = vmatprep.subr.mxu0 0.0
    %62 = vmatpush1.xpose.msra.mxu0 0.0
    %63 = vmatprep.subr.mxu0 0.0
    %64 = vmatpush1.xpose.msra.mxu0 0.0
    %65 = vmatprep.subr.mxu0 0.0
    %66 = vmatpush1.xpose.msra.mxu0 0.0
    %67 = vmatprep.subr.mxu0 0.0
    %68 = vmatpush1.xpose.msra.mxu0 0.0
    %69 = vmatprep.subr.mxu0 0.0
    %70 = vmatpush1.xpose.msra.mxu0 0.0
    %71 = vmatprep.subr.mxu0 0.0
    %72 = vmatpush1.xpose.msra.mxu0 0.0
    %73 = vmatprep.subr.mxu0 0.0
    %74 = vmatpush1.xpose.msra.mxu0 0.0
    %75 = vmatprep.subr.mxu0 0.0
    %76 = vmatpush1.xpose.msra.mxu0 0.0
    %77 = vmatprep.subr.mxu0 0.0
    %78 = vmatpush1.xpose.msra.mxu0 0.0
    %79 = vmatprep.subr.mxu0 0.0
    %80 = vmatpush1.xpose.msra.mxu0 0.0
    %81 = vmatprep.subr.mxu0 0.0
    %82 = vmatpush1.xpose.msra.mxu0 %v49
    %83 = vmatprep.subr.mxu0 0.0
    %84 = vmatpush2.xpose.msra.mxu0 0.0
    %85 = vmatprep.subr.mxu0 0.0
    %86 = vmatpush2.xpose.msra.mxu0 0.0
    %87 = vmatprep.subr.mxu0 0.0
    %88 = vmatpush2.xpose.msra.mxu0 0.0
    %89 = vmatprep.subr.mxu0 0.0
    %90 = vmatpush2.xpose.msra.mxu0 0.0
    %91 = vmatprep.subr.mxu0 0.0
    %92 = vmatpush2.xpose.msra.mxu0 0.0
    %93 = vmatprep.subr.mxu0 0.0
    %94 = vmatpush2.xpose.msra.mxu0 0.0
    %95 = vmatprep.subr.mxu0 0.0
    %96 = vmatpush2.xpose.msra.mxu0 0.0
    %97 = vmatprep.subr.mxu0 0.0
    %98 = vmatpush2.xpose.msra.mxu0 0.0
    %99 = vmatprep.subr.mxu0 0.0
    %100 = vmatpush2.xpose.msra.mxu0 0.0
    %101 = vmatprep.subr.mxu0 0.0
    %102 = vmatpush2.xpose.msra.mxu0 0.0
    %103 = vmatprep.subr.mxu0 0.0
    %104 = vmatpush2.xpose.msra.mxu0 0.0
    %105 = vmatprep.subr.mxu0 0.0
    %106 = vmatpush2.xpose.msra.mxu0 0.0
    %107 = vmatprep.subr.mxu0 0.0
    %108 = vmatpush2.xpose.msra.mxu0 0.0
    %109 = vmatprep.subr.mxu0 0.0
    %110 = vmatpush2.xpose.msra.mxu0 0.0
    %111 = vmatprep.subr.mxu0 0.0
    %112 = vmatpush2.xpose.msra.mxu0 0.0
    %113 = vmatprep.subr.mxu0 0.0
    %114 = vmatpush2.xpose.msra.mxu0 0.0
    %115 = vmatprep.mubr.f32.mxu0 0.0
    %116 = vmatmul.mubr.f32.gmra.mxu0 %v46
    %v117 = vpop.f32.mrf.mxu0
    %v118 = vadd.f32 %v43, %v117
    %v119 = vpop.f32.mrf.mxu0
    %120 = vdwg.mxu0
    %vm121 = vcmask 64512
    %122 = vst.msk [vmem:[#allocation8] sm:$0xff] %vm121, %v118
    // Predicated region
    $region22: #{tpu_custom_call.1} parent=1 // pred_check
      _
    $region23: #{tpu_custom_call.1} parent=1 // pred_check_branch
      %124 = sbr.rel (0) target = $region25
    $region24: #{tpu_custom_call.1} parent=1 // pred_region
      %s126 = ssub.s32 128, 128
      %127 = vsyncadd [#allocation5], %s126
      %s129 = sshll.u32 [#allocation8], 4
      %s130 = int_to_ptr.vmem [resolvable:$true] %s129
      %132 = dma.vmem_to_hbm [thread:$0]  %s130, 128, %s3, [#allocation5]
    $region25: #{tpu_custom_call.1} parent=1 // pred_fallthru
      _
    // Predicated region
    $region26: #{tpu_custom_call.1} parent=1 // pred_check
      _
    $region27: #{tpu_custom_call.1} parent=1 // pred_check_branch
      %134 = sbr.rel (0) target = $region29
    $region28: #{tpu_custom_call.1} parent=1 // pred_region
      %135 = dma.done [#allocation5], 128
    $region29: #{tpu_custom_call.1} parent=1 // pred_fallthru
      _
    %136 = vsyncpa [#allocation4], 1
    %137 = vsyncpa [#allocation7], 1
    %138 = vsyncpa [#allocation5], 1

</llo_original>
